<compile_context>
chip_gen: v5e
topology: v5e:2x2
jax: 0.10.0
libtpu: 0.0.40
codegen_flags: <defaults>
</compile_context>

<pallas_src>
import jax
import jax.numpy as jnp
from jax.experimental import pallas as pl
from jax.experimental.pallas import tpu as pltpu

NUM_CLASSES = 10
LANE_PAD = 128          # pad class dim to one full lane group
NEG_BIG = -1e30         # padded-class bias; exp(NEG_BIG - m) == 0 in f32


def _decoder_kernel(x_ref, w_ref, b_ref, o_ref):
    # Linear: logits = x @ W^T + b   (W^T pre-materialized, class-padded to 128)
    logits = jnp.dot(
        x_ref[...], w_ref[...], preferred_element_type=jnp.float32
    ) + b_ref[...].astype(jnp.float32)                       # (TB, 128)

    # log_softmax along class axis (dim=1 in the PyTorch module).
    # Padded columns have logit -1e30 -> never the max, exp()==0 in the sum.
    m = jnp.max(logits, axis=-1, keepdims=True)              # (TB, 1)
    shifted = logits - m
    lse = jnp.log(jnp.sum(jnp.exp(shifted), axis=-1, keepdims=True))
    o_ref[...] = (shifted - lse).astype(o_ref.dtype)


def face_attribute_decoder_cifar10_single_task(x, mask, weight, bias):
    """
    x:      (B, D) float32
    mask:   anything — passed through unchanged (matches PyTorch return)
    weight: (10, D) float32  (nn.Linear.weight convention)
    bias:   (10,)  float32
    returns (log_probs (B, 10), mask)
    """
    B, D = x.shape
    itemsize = jnp.dtype(x.dtype).itemsize

    # --- class padding: weight (D, 128) with zero pad cols, bias (1, 128) ---
    w_t = (
        jnp.zeros((D, LANE_PAD), dtype=weight.dtype)
        .at[:, :NUM_CLASSES]
        .set(jnp.transpose(weight))
    )
    b_pad = (
        jnp.full((1, LANE_PAD), NEG_BIG, dtype=jnp.float32)
        .at[0, :NUM_CLASSES]
        .set(bias.astype(jnp.float32))
    )

    # --- batch tile: ~4 MiB of x per step, multiple of 8, capped at batch ---
    target_bytes = 4 * 1024 * 1024
    tb = (target_bytes // max(D * itemsize, 1)) // 8 * 8
    tb = max(8, min(2048, tb))
    tb = min(tb, ((B + 7) // 8) * 8)

    n_tiles = pl.cdiv(B, tb)
    b_padded = n_tiles * tb
    if b_padded != B:
        x_in = jnp.zeros((b_padded, D), dtype=x.dtype).at[:B].set(x)
    else:
        x_in = x

    out_full = pl.pallas_call(
        _decoder_kernel,
        out_shape=jax.ShapeDtypeStruct((b_padded, LANE_PAD), x.dtype),
        grid_spec=pl.GridSpec(
            grid=(n_tiles,),
            in_specs=[
                pl.BlockSpec((tb, D), lambda i: (i, 0)),          # x tile streams
                pl.BlockSpec((D, LANE_PAD), lambda i: (0, 0)),    # W resident
                pl.BlockSpec((1, LANE_PAD), lambda i: (0, 0)),    # bias resident
            ],
            out_specs=pl.BlockSpec((tb, LANE_PAD), lambda i: (i, 0)),
        ),
        compiler_params=pltpu.CompilerParams(
            dimension_semantics=("parallel",),                    # v7x megacore
        ),
    )(x_in, w_t, b_pad)

    out = out_full[:B, :NUM_CLASSES]
    return out, mask


def _reference(x, weight, bias):
    logits = x @ weight.T + bias
    return jax.nn.log_softmax(logits, axis=1)


if __name__ == "__main__":
    key = jax.random.PRNGKey(0)
    k_x, k_w, k_b, k_m = jax.random.split(key, 4)

    B, D = 8, 32  # small shapes; module default dim=512, kernel is shape-generic
    x = jax.random.normal(k_x, (B, D), dtype=jnp.float32)
    mask = jax.random.normal(k_m, (B, 1), dtype=jnp.float32)

    # Deterministic parameter init (nn.Linear shapes: weight (10, D), bias (10,))
    bound = 1.0 / (D ** 0.5)
    weight = jax.random.uniform(k_w, (NUM_CLASSES, D), jnp.float32, -bound, bound)
    bias = jax.random.uniform(k_b, (NUM_CLASSES,), jnp.float32, -bound, bound)

    out, mask_out = face_attribute_decoder_cifar10_single_task(x, mask, weight, bias)
    out = jax.block_until_ready(out)

    ref = _reference(x, weight, bias)
    assert out.shape == (B, NUM_CLASSES)
    assert jnp.allclose(out, ref, atol=1e-5, rtol=1e-5), "mismatch vs reference"
    assert mask_out is mask

    print("KERNEL_OK")
</pallas_src>

<mosaic_0001>
module attributes {stable_mosaic.version = 11 : i64} {
  func.func @_decoder_kernel(%arg0: i32, %arg1: memref<8x32xf32, #tpu.memory_space<vmem>>, %arg2: memref<32x128xf32, #tpu.memory_space<vmem>>, %arg3: memref<1x128xf32, #tpu.memory_space<vmem>>, %arg4: memref<8x128xf32, #tpu.memory_space<vmem>>) attributes {dimension_semantics = [#tpu.dimension_semantics<parallel>], iteration_bounds = array<i64: 1>, scalar_prefetch = 0 : i64, scratch_operands = 0 : i64, tpu.core_type = #tpu.core_type<tc>, window_params = [{transform_indices = @transform_0, window_bounds = array<i64: 8, 32>}, {pipeline_mode = #tpu.pipeline_mode<synchronous>, transform_indices = @transform_1, window_bounds = array<i64: 32, 128>}, {pipeline_mode = #tpu.pipeline_mode<synchronous>, transform_indices = @transform_2, window_bounds = array<i64: 1, 128>}, {transform_indices = @transform_3, window_bounds = array<i64: 8, 128>}]} {
    %c0 = arith.constant 0 : index
    %c0_0 = arith.constant 0 : index
    %0 = vector.load %arg1[%c0, %c0_0] : memref<8x32xf32, #tpu.memory_space<vmem>>, vector<8x32xf32>
    %c0_1 = arith.constant 0 : index
    %c0_2 = arith.constant 0 : index
    %1 = vector.load %arg2[%c0_1, %c0_2] : memref<32x128xf32, #tpu.memory_space<vmem>>, vector<32x128xf32>
    %cst = arith.constant dense<0.000000e+00> : vector<8x128xf32>
    %2 = tpu.matmul %0, %1, %cst {dimension_numbers = #tpu.dot_dimension_numbers<[1], [0], [0], [1], [0, 0, 1, 1], [], []>} : vector<8x32xf32>, vector<32x128xf32>, vector<8x128xf32> -> vector<8x128xf32>
    %c0_3 = arith.constant 0 : index
    %c0_4 = arith.constant 0 : index
    %3 = vector.load %arg3[%c0_3, %c0_4] : memref<1x128xf32, #tpu.memory_space<vmem>>, vector<1x128xf32>
    %4 = vector.broadcast %3 : vector<1x128xf32> to vector<8x128xf32>
    %5 = arith.addf %2, %4 : vector<8x128xf32>
    %cst_5 = arith.constant dense<0xFF800000> : vector<8xf32>
    %6 = vector.multi_reduction <maximumf>, %5, %cst_5 [1] : vector<8x128xf32> to vector<8xf32>
    %7 = vector.shape_cast %6 : vector<8xf32> to vector<8x1xf32>
    %8 = vector.broadcast %7 : vector<8x1xf32> to vector<8x128xf32>
    %9 = arith.subf %5, %8 : vector<8x128xf32>
    %10 = math.exp %9 : vector<8x128xf32>
    %cst_6 = arith.constant dense<0.000000e+00> : vector<8xf32>
    %11 = vector.multi_reduction <add>, %10, %cst_6 [1] : vector<8x128xf32> to vector<8xf32>
    %12 = vector.shape_cast %11 : vector<8xf32> to vector<8x1xf32>
    %13 = math.log %12 : vector<8x1xf32>
    %14 = vector.broadcast %13 : vector<8x1xf32> to vector<8x128xf32>
    %15 = arith.subf %9, %14 : vector<8x128xf32>
    %c0_7 = arith.constant 0 : index
    %c0_8 = arith.constant 0 : index
    %16 = vector.load %arg4[%c0_7, %c0_8] : memref<8x128xf32, #tpu.memory_space<vmem>>, vector<8x128xf32>
    tpu.vector_store %arg4[%c0_7, %c0_8], %15 {strides = array<i32>} : memref<8x128xf32, #tpu.memory_space<vmem>>, vector<8x128xf32>,
    return
  }
  func.func @transform_0(%arg0: i32) -> (i32, i32) {
    %c0_i32 = arith.constant 0 : i32
    %c0_i32_0 = arith.constant 0 : i32
    return %arg0, %c0_i32 : i32, i32
  }
  func.func @transform_1(%arg0: i32) -> (i32, i32) {
    %c0_i32 = arith.constant 0 : i32
    %c0_i32_0 = arith.constant 0 : i32
    %c0_i32_1 = arith.constant 0 : i32
    return %c0_i32, %c0_i32_0 : i32, i32
  }
  func.func @transform_2(%arg0: i32) -> (i32, i32) {
    %c0_i32 = arith.constant 0 : i32
    %c0_i32_0 = arith.constant 0 : i32
    %c0_i32_1 = arith.constant 0 : i32
    return %c0_i32, %c0_i32_0 : i32, i32
  }
  func.func @transform_3(%arg0: i32) -> (i32, i32) {
    %c0_i32 = arith.constant 0 : i32
    %c0_i32_0 = arith.constant 0 : i32
    return %arg0, %c0_i32 : i32, i32
  }
}

</mosaic_0001>

<llo_original>
// kernel: tpu_custom_call.1
$region0: #{tpu_custom_call.1}
  #allocation0 [shape = 'u32[]', space=smem, size = 0x4, offset = 0x4, fixed_abs, tag = 'smem constant byte address 0x4 - core index']
  #allocation1 [shape = 'u32[72,128]{1,0:T(1,128)}', space=vmem, size = 0x9000, scoped, tag = 'internal scratch']
  %s0 = inlined_call_operand.hbm [shape: f32[8,32], index: 0, kind: input, shape index: {}]
  %s1 = inlined_call_operand.hbm [shape: f32[32,128], index: 1, kind: input, shape index: {}]
  %s2 = inlined_call_operand.vmem [shape: f32[1,128], index: 2, kind: input, shape index: {}]
  %s3 = inlined_call_operand.hbm [shape: f32[8,128], index: 3, kind: output, shape index: {}]
  %s4 = sld [smem:[#allocation0]]
  $region30: #{tpu_custom_call.1} parent=0
    _
  %s6 = ssub.s32 1, %s4
  %s7 = scalar_select 0, %s6, %s4
  $region1: #{tpu_custom_call.1} parent=0
    #allocation2 [shape = 'u8[4096]{0}', space=vmem, size = 0x1000, scoped, tag = 'input window, operand 0, single buffered']
    #allocation3 [shape = 's32[1]{0}', space=sflag, size = 0x4, scoped, tag = 'scoped memory for tpu_custom_call.1']
    #allocation4 [shape = 's32[1]{0}', space=sflag, size = 0x4, scoped, tag = 'scoped memory for tpu_custom_call.1']
    #allocation5 [shape = 'u8[16384]{0}', space=vmem, size = 0x4000, scoped, tag = 'input window, operand 1, single buffered']
    #allocation6 [shape = 's32[1]{0}', space=sflag, size = 0x4, scoped, tag = 'scoped memory for tpu_custom_call.1']
    #allocation7 [shape = 'u8[4096]{0}', space=vmem, size = 0x1000, scoped, tag = 'output window, operand 0, single buffered']
    %8 = vsyncpa [#allocation3], 0
    %9 = vsyncpa [#allocation6], 0
    %10 = vsyncpa [#allocation4], 0
    // Predicated region
    $region2: #{tpu_custom_call.1} parent=1 // pred_check
      _
    $region3: #{tpu_custom_call.1} parent=1 // pred_check_branch
      %12 = sbr.rel (0) target = $region5
    $region4: #{tpu_custom_call.1} parent=1 // pred_region
      %14 = vsyncadd [#allocation3], 0
      %s16 = sshll.u32 %s0, 4
      %s17 = int_to_ptr.hbm [resolvable:$true] %s16
      %s18 = sshll.u32 [#allocation2], 4
      %s19 = int_to_ptr.vmem [resolvable:$true] %s18
      %21 = dma.hbm_to_vmem [thread:$0]  %s17, 128, %s19, [#allocation3]
    $region5: #{tpu_custom_call.1} parent=1 // pred_fallthru
      _
    // Predicated region
    $region6: #{tpu_custom_call.1} parent=1 // pred_check
      _
    $region7: #{tpu_custom_call.1} parent=1 // pred_check_branch
      %23 = sbr.rel (0) target = $region9
    $region8: #{tpu_custom_call.1} parent=1 // pred_region
      %25 = vsyncadd [#allocation6], 0
      %s26 = sshll.u32 %s1, 4
      %s27 = int_to_ptr.hbm [resolvable:$true] %s26
      %s28 = sshll.u32 [#allocation5], 4
      %s29 = int_to_ptr.vmem [resolvable:$true] %s28
      %34 = dma.hbm_to_vmem [thread:$0]  %s27, 512, %s29, [#allocation6], 128, 128, 8
    $region9: #{tpu_custom_call.1} parent=1 // pred_fallthru
      _
    // Predicated region
    $region10: #{tpu_custom_call.1} parent=1 // pred_check
      _
    $region11: #{tpu_custom_call.1} parent=1 // pred_check_branch
      %36 = sbr.rel (0) target = $region13
    $region12: #{tpu_custom_call.1} parent=1 // pred_region
      _
    $region13: #{tpu_custom_call.1} parent=1 // pred_fallthru
      _
    // Predicated region
    $region14: #{tpu_custom_call.1} parent=1 // pred_check
      _
    $region15: #{tpu_custom_call.1} parent=1 // pred_check_branch
      %38 = sbr.rel (0) target = $region17
    $region16: #{tpu_custom_call.1} parent=1 // pred_region
      %40 = dma.done [#allocation3], 128
    $region17: #{tpu_custom_call.1} parent=1 // pred_fallthru
      _
    // Predicated region
    $region18: #{tpu_custom_call.1} parent=1 // pred_check
      _
    $region19: #{tpu_custom_call.1} parent=1 // pred_check_branch
      %42 = sbr.rel (0) target = $region21
    $region20: #{tpu_custom_call.1} parent=1 // pred_region
      %44 = dma.done [#allocation6], 512
    $region21: #{tpu_custom_call.1} parent=1 // pred_fallthru
      _
    %v45 = vld [vmem:[#allocation2] sm:$0xff]
    %v46 = vld [vmem:[#allocation5] sm:$0xff]
    %v47 = vld [vmem:[#allocation5 + $0x8] sm:$0xff]
    %v48 = vld [vmem:[#allocation5 + $0x10] sm:$0xff]
    %v49 = vld [vmem:[#allocation5 + $0x18] sm:$0xff]
    %v50 = vld [vmem:[%s2] sm:$0x1]
    %v52 = vperm.slane %v50, 0
    %vm54 = vcmask 261120
    %v56 = vsel %vm54, %v45, 0
    %58 = vmatpush.msra.mxu0 0.0
    %59 = vmatpush.msra.mxu0 0.0
    %60 = vmatpush.msra.mxu0 0.0
    %61 = vmatpush.msra.mxu0 0.0
    %62 = vmatpush.msra.mxu0 0.0
    %63 = vmatpush.msra.mxu0 0.0
    %64 = vmatpush.msra.mxu0 0.0
    %65 = vmatpush.msra.mxu0 0.0
    %66 = vmatpush.msra.mxu0 0.0
    %67 = vmatpush.msra.mxu0 0.0
    %68 = vmatpush.msra.mxu0 0.0
    %69 = vmatpush.msra.mxu0 0.0
    %70 = vmatpush.msra.mxu0 %v49
    %71 = vmatpush.msra.mxu0 %v48
    %72 = vmatpush.msra.mxu0 %v47
    %73 = vmatpush.msra.mxu0 %v46
    %74 = vmatmul.f32.gmra.mxu0 %v56
    %v75 = vpop.f32.mrf.mxu0
    %v76 = vadd.f32 %v52, %v75
    %77 = vdwg.mxu0
    %78 = vmax.xlane.f32.xlu0 %v76
    %v79 = vpop.xlane.xlu0 %78
    %v80 = vsub.f32 %v76, %v79
    %v81 = vmul.f32 %v80, 1.442695
    %v82 = vpow.pop %v81
    %83 = vadd.xlane.f32.xlu0 %v82
    %v84 = vpop.xlane.xlu0 %83
    %v85 = vlog2.pop %v84
    %v86 = vmul.f32 %v85, 0.6931472
    %v87 = vsub.f32 %v80, %v86
    %88 = vst [vmem:[#allocation7] sm:$0xff] %v87
    // Predicated region
    $region22: #{tpu_custom_call.1} parent=1 // pred_check
      _
    $region23: #{tpu_custom_call.1} parent=1 // pred_check_branch
      %90 = sbr.rel (0) target = $region25
    $region24: #{tpu_custom_call.1} parent=1 // pred_region
      %92 = vsyncadd [#allocation4], 0
      %s94 = sshll.u32 [#allocation7], 4
      %s95 = int_to_ptr.vmem [resolvable:$true] %s94
      %s96 = sshll.u32 %s3, 4
      %s97 = int_to_ptr.hbm [resolvable:$true] %s96
      %99 = dma.vmem_to_hbm [thread:$0]  %s95, 128, %s97, [#allocation4]
    $region25: #{tpu_custom_call.1} parent=1 // pred_fallthru
      _
    // Predicated region
    $region26: #{tpu_custom_call.1} parent=1 // pred_check
      _
    $region27: #{tpu_custom_call.1} parent=1 // pred_check_branch
      %101 = sbr.rel (0) target = $region29
    $region28: #{tpu_custom_call.1} parent=1 // pred_region
      %103 = dma.done [#allocation4], 128
    $region29: #{tpu_custom_call.1} parent=1 // pred_fallthru
      _
    %104 = vsyncpa [#allocation3], 1
    %105 = vsyncpa [#allocation6], 1
    %106 = vsyncpa [#allocation4], 1

</llo_original>
